<compile_context>
chip_gen: v6e
topology: v6e:2x2x1
jax: 0.10.0
libtpu: 0.0.40
codegen_flags: <defaults>
</compile_context>

<pallas_src>
import math

import jax
import jax.numpy as jnp
from jax import lax
from jax.experimental import pallas as pl
from jax.experimental.pallas import tpu as pltpu

HIDDEN = 128
OUT = 1


def _round_up(n: int, m: int) -> int:
    return ((n + m - 1) // m) * m


def _discriminator_kernel(x_ref, w1_ref, b1_ref, w2_ref, b2_ref, o_ref):
    # x_ref: (tb, D) f32, w1_ref: (D, 128) f32, b1_ref: (1, 128) f32,
    # w2_ref: (8, 128) f32 (row-replicated), b2_ref: (1, 1) f32 in SMEM,
    # o_ref: (1, tb) f32 (lane-dense output row).
    x = x_ref[...].astype(jnp.bfloat16)        # cast hides under the x DMA
    w1 = w1_ref[...].astype(jnp.bfloat16)
    h = jnp.dot(x, w1, preferred_element_type=jnp.float32)   # (tb, 128) MXU
    h = jnp.maximum(h + b1_ref[...], 0.0)                     # bias + ReLU (VPU, f32)

    # Second layer (128 -> 1), emitted lane-major: contract the hidden dim of
    # the replicated w2 slab (8, 128) against the hidden dim of h (tb, 128) on
    # the MXU -> (8, tb); row 0 is the logit row.  This produces the lane-dense
    # (1, tb) output directly (dense stores + dense writeback DMA), instead of
    # a lane-sparse (tb, 1) column.
    logits8 = lax.dot_general(
        w2_ref[...].astype(jnp.bfloat16), h.astype(jnp.bfloat16),
        dimension_numbers=(((1,), (1,)), ((), ())),
        preferred_element_type=jnp.float32)                    # (8, tb)
    logits = logits8[0:1, :] + b2_ref[0, 0]                    # (1, tb)

    # Clamp so exp never overflows to inf feeding the approx reciprocal;
    # sigmoid(+-30) already rounds to 1.0 / 9.4e-14 in f32.
    logits = jnp.clip(logits, -30.0, 30.0)
    o_ref[...] = pl.reciprocal(1.0 + jnp.exp(-logits), approx=True)


def _choose_block_rows(batch: int, input_dim: int, block_rows):
    """Batch-tile rows: sized by bytes, lane-aligned, VMEM-budget aware."""
    if block_rows is not None:
        rows = block_rows
    else:
        # ~2 MiB of f32 activations per tile keeps per-step overhead (~0.35us)
        # negligible and the DMA past the HBM-roofline knee.
        rows = (2 << 20) // (4 * input_dim)
        rows = max(512, min(rows, 8192))
        # Keep double-buffered x tiles + resident w1 well inside a budget that
        # is safe on every generation (v5e 16 MiB default scoped limit is
        # raised explicitly below; v7x has 64 MiB physical per TC).
        budget = 24 << 20
        w1_bytes = 2 * input_dim * HIDDEN * 4
        cap = max(budget - w1_bytes, 2 << 20) // (2 * 4 * input_dim)
        rows = min(rows, max(128, cap))
        # Keep >=2 grid steps for large batches so v7x's two TensorCores can
        # split the "parallel" batch axis (near-zero cost on v5e/v6e).
        if batch >= 1024:
            rows = min(rows, _round_up((batch + 1) // 2, 128))
    if rows >= batch:
        return batch                           # single tile covering the batch
    return max(128, (rows // 128) * 128)       # lane-aligned for the (1, tb) output


def _vmem_limit_bytes(tb: int, input_dim: int) -> int:
    x_bytes = 2 * tb * input_dim * 4              # double-buffered f32 x tiles
    w1_bytes = 2 * input_dim * HIDDEN * 4         # resident w1 (worst case 2 bufs)
    out_bytes = 2 * 8 * _round_up(tb, 128) * 4    # (1, tb) blocks, sublane-padded
    spill = 4 * tb * HIDDEN * 4                   # headroom for h intermediates
    need = x_bytes + w1_bytes + out_bytes + spill + (1 << 20)
    return int(min(48 << 20, max(16 << 20, int(need * 1.2))))


def discriminator_forward(x, w1, b1, w2, b2, *, block_rows=None):
    """x: (B, D) float32 -> (B, 1) float32, matching the PyTorch module."""
    B, D = x.shape
    tb = _choose_block_rows(B, D, block_rows)
    grid = (pl.cdiv(B, tb),)

    # Tiny (<=4 KiB) parameter reshapes; x itself is passed through untouched.
    b1_2d = jnp.reshape(b1, (1, HIDDEN))
    w2_slab = jnp.tile(jnp.reshape(w2, (1, HIDDEN)), (8, 1))   # MXU-friendly slab
    b2_2d = jnp.reshape(b2, (1, 1))

    out = pl.pallas_call(
        _discriminator_kernel,
        out_shape=jax.ShapeDtypeStruct((1, B), jnp.float32),
        grid=grid,
        in_specs=[
            # Activations: one (tb, D) row tile per step (double-buffered DMA);
            # the last tile may be partial (masked by Pallas, rows independent).
            pl.BlockSpec((tb, D), lambda i: (i, 0)),
            # Weights / biases: constant block index -> fetched once, resident.
            pl.BlockSpec((D, HIDDEN), lambda i: (0, 0)),
            pl.BlockSpec((1, HIDDEN), lambda i: (0, 0)),
            pl.BlockSpec((8, HIDDEN), lambda i: (0, 0)),
            # Final bias as an SMEM scalar.
            pl.BlockSpec(memory_space=pltpu.MemorySpace.SMEM),
        ],
        # Lane-dense output row per tile.
        out_specs=pl.BlockSpec((1, tb), lambda i: (0, i)),
        compiler_params=pltpu.CompilerParams(
            dimension_semantics=("parallel",),
            vmem_limit_bytes=_vmem_limit_bytes(tb, D),
        ),
    )(x, w1, b1_2d, w2_slab, b2_2d)

    return out.reshape(B, 1)


def init_params(input_dim: int, key):
    """Deterministic init mimicking PyTorch nn.Linear (uniform +-1/sqrt(fan_in))."""
    k1, k2, k3, k4 = jax.random.split(key, 4)
    bound1 = 1.0 / math.sqrt(input_dim)
    bound2 = 1.0 / math.sqrt(HIDDEN)
    # Stored as (in, out) so the kernel computes x @ W directly.
    w1 = jax.random.uniform(k1, (input_dim, HIDDEN), jnp.float32, -bound1, bound1)
    b1 = jax.random.uniform(k2, (1, HIDDEN), jnp.float32, -bound1, bound1)
    w2 = jax.random.uniform(k3, (HIDDEN, OUT), jnp.float32, -bound2, bound2)
    b2 = jax.random.uniform(k4, (1, OUT), jnp.float32, -bound2, bound2)
    return w1, b1, w2, b2


def _reference(x, w1, b1, w2, b2):
    return jax.nn.sigmoid(jnp.maximum(x @ w1 + b1, 0.0) @ w2 + b2)


if __name__ == "__main__":
    key = jax.random.PRNGKey(0)
    kx1, kx2, kp1, kp2 = jax.random.split(key, 4)

    # Test 1: small canonical shape (single tile), batch=8, input_dim=32.
    batch, input_dim = 8, 32
    x = jax.random.normal(kx1, (batch, input_dim), jnp.float32)
    w1, b1, w2, b2 = init_params(input_dim, kp1)
    out = jax.block_until_ready(discriminator_forward(x, w1, b1, w2, b2))
    ref = _reference(x, w1, b1, w2, b2)
    assert out.shape == (batch, 1)
    # bf16 MXU inputs + approx reciprocal -> loose but meaningful tolerance
    # (sigmoid outputs are in [0, 1]).
    assert jnp.allclose(out, ref, atol=3e-2, rtol=0.0), float(jnp.max(jnp.abs(out - ref)))

    # Test 2: exercises the batch grid with a ragged partial last tile.
    batch2, input_dim2 = 1234, 64
    x2 = jax.random.normal(kx2, (batch2, input_dim2), jnp.float32)
    p2 = init_params(input_dim2, kp2)
    out2 = jax.block_until_ready(discriminator_forward(x2, *p2, block_rows=512))
    ref2 = _reference(x2, *p2)
    assert out2.shape == (batch2, 1)
    assert jnp.allclose(out2, ref2, atol=3e-2, rtol=0.0), float(jnp.max(jnp.abs(out2 - ref2)))

    print("KERNEL_OK")
</pallas_src>

<mosaic_0001>
module attributes {stable_mosaic.version = 11 : i64} {
  func.func @_discriminator_kernel(%arg0: i32, %arg1: memref<8x32xf32, #tpu.memory_space<vmem>>, %arg2: memref<32x128xf32, #tpu.memory_space<vmem>>, %arg3: memref<1x128xf32, #tpu.memory_space<vmem>>, %arg4: memref<8x128xf32, #tpu.memory_space<vmem>>, %arg5: memref<1x1xf32, #tpu.memory_space<smem>>, %arg6: memref<1x8xf32, #tpu.memory_space<vmem>>) attributes {dimension_semantics = [#tpu.dimension_semantics<parallel>], iteration_bounds = array<i64: 1>, scalar_prefetch = 0 : i64, scratch_operands = 0 : i64, tpu.core_type = #tpu.core_type<tc>, window_params = [{transform_indices = @transform_0, window_bounds = array<i64: 8, 32>}, {pipeline_mode = #tpu.pipeline_mode<synchronous>, transform_indices = @transform_1, window_bounds = array<i64: 32, 128>}, {pipeline_mode = #tpu.pipeline_mode<synchronous>, transform_indices = @transform_2, window_bounds = array<i64: 1, 128>}, {pipeline_mode = #tpu.pipeline_mode<synchronous>, transform_indices = @transform_3, window_bounds = array<i64: 8, 128>}, {transform_indices = @transform_4, window_bounds = array<i64: 1, 1>}, {transform_indices = @transform_5, window_bounds = array<i64: 1, 8>}]} {
    %c0 = arith.constant 0 : index
    %c0_0 = arith.constant 0 : index
    %0 = vector.load %arg1[%c0, %c0_0] : memref<8x32xf32, #tpu.memory_space<vmem>>, vector<8x32xf32>
    %1 = arith.truncf %0 : vector<8x32xf32> to vector<8x32xbf16>
    %c0_1 = arith.constant 0 : index
    %c0_2 = arith.constant 0 : index
    %2 = vector.load %arg2[%c0_1, %c0_2] : memref<32x128xf32, #tpu.memory_space<vmem>>, vector<32x128xf32>
    %3 = arith.truncf %2 : vector<32x128xf32> to vector<32x128xbf16>
    %cst = arith.constant dense<0.000000e+00> : vector<8x128xf32>
    %4 = tpu.matmul %1, %3, %cst {dimension_numbers = #tpu.dot_dimension_numbers<[1], [0], [0], [1], [0, 0, 1, 1], [], []>} : vector<8x32xbf16>, vector<32x128xbf16>, vector<8x128xf32> -> vector<8x128xf32>
    %c0_3 = arith.constant 0 : index
    %c0_4 = arith.constant 0 : index
    %5 = vector.load %arg3[%c0_3, %c0_4] : memref<1x128xf32, #tpu.memory_space<vmem>>, vector<1x128xf32>
    %6 = vector.broadcast %5 : vector<1x128xf32> to vector<8x128xf32>
    %7 = arith.addf %4, %6 : vector<8x128xf32>
    %cst_5 = arith.constant 0.000000e+00 : f32
    %8 = vector.broadcast %cst_5 : f32 to vector<8x128xf32>
    %9 = arith.maximumf %7, %8 : vector<8x128xf32>
    %c0_6 = arith.constant 0 : index
    %c0_7 = arith.constant 0 : index
    %10 = vector.load %arg4[%c0_6, %c0_7] : memref<8x128xf32, #tpu.memory_space<vmem>>, vector<8x128xf32>
    %11 = arith.truncf %10 : vector<8x128xf32> to vector<8x128xbf16>
    %12 = arith.truncf %9 : vector<8x128xf32> to vector<8x128xbf16>
    %cst_8 = arith.constant dense<0.000000e+00> : vector<8x8xf32>
    %13 = tpu.matmul %11, %12, %cst_8 {dimension_numbers = #tpu.dot_dimension_numbers<[1], [1], [0], [0], [0, 0, 1, 0], [], []>} : vector<8x128xbf16>, vector<8x128xbf16>, vector<8x8xf32> -> vector<8x8xf32>
    %14 = vector.extract_strided_slice %13 {offsets = [0, 0], sizes = [1, 8], strides = [1, 1]} : vector<8x8xf32> to vector<1x8xf32>
    %c0_9 = arith.constant 0 : index
    %c0_10 = arith.constant 0 : index
    %15 = memref.load %arg5[%c0_9, %c0_10] : memref<1x1xf32, #tpu.memory_space<smem>>
    %16 = vector.broadcast %15 : f32 to vector<1x8xf32>
    %17 = arith.addf %14, %16 : vector<1x8xf32>
    %cst_11 = arith.constant -3.000000e+01 : f32
    %cst_12 = arith.constant 3.000000e+01 : f32
    %18 = vector.broadcast %cst_11 : f32 to vector<1x8xf32>
    %19 = arith.maximumf %18, %17 : vector<1x8xf32>
    %20 = vector.broadcast %cst_12 : f32 to vector<1x8xf32>
    %21 = arith.minimumf %20, %19 : vector<1x8xf32>
    %cst_13 = arith.constant 0.000000e+00 : f32
    %22 = vector.broadcast %cst_13 : f32 to vector<1x8xf32>
    %23 = arith.subf %22, %21 : vector<1x8xf32>
    %24 = math.exp %23 : vector<1x8xf32>
    %cst_14 = arith.constant 1.000000e+00 : f32
    %25 = vector.broadcast %cst_14 : f32 to vector<1x8xf32>
    %26 = arith.addf %25, %24 : vector<1x8xf32>
    %27 = tpu.reciprocal %26 {approx = true} : vector<1x8xf32> -> vector<1x8xf32>
    %c0_15 = arith.constant 0 : index
    %c0_16 = arith.constant 0 : index
    %28 = vector.load %arg6[%c0_15, %c0_16] : memref<1x8xf32, #tpu.memory_space<vmem>>, vector<1x8xf32>
    tpu.vector_store %arg6[%c0_15, %c0_16], %27 {strides = array<i32>} : memref<1x8xf32, #tpu.memory_space<vmem>>, vector<1x8xf32>,
    return
  }
  func.func @transform_0(%arg0: i32) -> (i32, i32) {
    %c0_i32 = arith.constant 0 : i32
    %c0_i32_0 = arith.constant 0 : i32
    return %arg0, %c0_i32 : i32, i32
  }
  func.func @transform_1(%arg0: i32) -> (i32, i32) {
    %c0_i32 = arith.constant 0 : i32
    %c0_i32_0 = arith.constant 0 : i32
    %c0_i32_1 = arith.constant 0 : i32
    return %c0_i32, %c0_i32_0 : i32, i32
  }
  func.func @transform_2(%arg0: i32) -> (i32, i32) {
    %c0_i32 = arith.constant 0 : i32
    %c0_i32_0 = arith.constant 0 : i32
    %c0_i32_1 = arith.constant 0 : i32
    return %c0_i32, %c0_i32_0 : i32, i32
  }
  func.func @transform_3(%arg0: i32) -> (i32, i32) {
    %c0_i32 = arith.constant 0 : i32
    %c0_i32_0 = arith.constant 0 : i32
    %c0_i32_1 = arith.constant 0 : i32
    return %c0_i32, %c0_i32_0 : i32, i32
  }
  func.func @transform_4(%arg0: i32) -> (i32, i32) {
    %c0_i32 = arith.constant 0 : i32
    %c0_i32_0 = arith.constant 0 : i32
    %c0_i32_1 = arith.constant 0 : i32
    return %c0_i32, %c0_i32_0 : i32, i32
  }
  func.func @transform_5(%arg0: i32) -> (i32, i32) {
    %c0_i32 = arith.constant 0 : i32
    %c0_i32_0 = arith.constant 0 : i32
    return %c0_i32, %arg0 : i32, i32
  }
}

</mosaic_0001>

<llo_original>
// kernel: tpu_custom_call.1
$region0: #{tpu_custom_call.1}
  #allocation0 [shape = 'u32[]', space=smem, size = 0x4, offset = 0x4, fixed_abs, tag = 'smem constant byte address 0x4 - core index']
  #allocation1 [shape = 'u32[144,128]{1,0:T(1,128)}', space=vmem, size = 0x12000, scoped, tag = 'internal scratch']
  #allocation2 [shape = 'f32[1,1]{1,0:T(1,128)S(6)}', space=smem, size = 0x200, scoped, tag = 'scoped memory for tpu_custom_call.1']
  %s0 = inlined_call_operand.hbm [shape: f32[8,32], index: 0, kind: input, shape index: {}]
  %s1 = inlined_call_operand.hbm [shape: f32[32,128], index: 1, kind: input, shape index: {}]
  %s2 = inlined_call_operand.vmem [shape: f32[1,128], index: 2, kind: input, shape index: {}]
  %s3 = inlined_call_operand.hbm [shape: f32[8,128], index: 3, kind: input, shape index: {}]
  %s4 = inlined_call_operand.<no memory space> [shape: f32[1,1], index: 4, kind: input, shape index: {}]
  %s5 = inlined_call_operand.hbm [shape: f32[1,8], index: 5, kind: output, shape index: {}]
  %s6 = sld [smem:[#allocation0]]
  $region42: #{tpu_custom_call.1} parent=0
    _
  %s8 = ssub.s32 1, %s6
  %s9 = scalar_select 0, %s8, %s6
  %10 = sst [smem:[#allocation2]] %s4
  $region1: #{tpu_custom_call.1} parent=0
    #allocation3 [shape = 'u8[4096]{0}', space=vmem, size = 0x1000, scoped, tag = 'input window, operand 0, single buffered']
    #allocation4 [shape = 's32[1]{0}', space=sflag, size = 0x4, scoped, tag = 'scoped memory for tpu_custom_call.1']
    #allocation5 [shape = 's32[1]{0}', space=sflag, size = 0x4, scoped, tag = 'scoped memory for tpu_custom_call.1']
    #allocation6 [shape = 'u8[16384]{0}', space=vmem, size = 0x4000, scoped, tag = 'input window, operand 1, single buffered']
    #allocation7 [shape = 's32[1]{0}', space=sflag, size = 0x4, scoped, tag = 'scoped memory for tpu_custom_call.1']
    #allocation8 [shape = 'u8[4096]{0}', space=vmem, size = 0x1000, scoped, tag = 'input window, operand 3, single buffered']
    #allocation9 [shape = 'u8[512]{0}', space=vmem, size = 0x400, scoped, tag = 'output window, operand 0, single buffered']
    %11 = vsyncpa [#allocation4], 0
    %12 = vsyncpa [#allocation7], 0
    %13 = vsyncpa [#allocation5], 0
    // Predicated region
    $region2: #{tpu_custom_call.1} parent=1 // pred_check
      _
    $region3: #{tpu_custom_call.1} parent=1 // pred_check_branch
      %15 = sbr.rel (0) target = $region5
    $region4: #{tpu_custom_call.1} parent=1 // pred_region
      %s17 = ssub.s32 128, 128
      %18 = vsyncadd [#allocation4], %s17
      %s20 = sshll.u32 [#allocation3], 4
      %s21 = int_to_ptr.vmem [resolvable:$true] %s20
      %23 = dma.hbm_to_vmem [thread:$0]  %s0, 128, %s21, [#allocation4]
    $region5: #{tpu_custom_call.1} parent=1 // pred_fallthru
      _
    // Predicated region
    $region6: #{tpu_custom_call.1} parent=1 // pred_check
      _
    $region7: #{tpu_custom_call.1} parent=1 // pred_check_branch
      %25 = sbr.rel (0) target = $region9
    $region8: #{tpu_custom_call.1} parent=1 // pred_region
      %s27 = ssub.s32 512, 512
      %28 = vsyncadd [#allocation7], %s27
      %s29 = sshll.u32 [#allocation6], 4
      %s30 = int_to_ptr.vmem [resolvable:$true] %s29
      %35 = dma.hbm_to_vmem [thread:$0]  %s1, 512, %s30, [#allocation7], 128, 128, 8
    $region9: #{tpu_custom_call.1} parent=1 // pred_fallthru
      _
    // Predicated region
    $region10: #{tpu_custom_call.1} parent=1 // pred_check
      _
    $region11: #{tpu_custom_call.1} parent=1 // pred_check_branch
      %37 = sbr.rel (0) target = $region13
    $region12: #{tpu_custom_call.1} parent=1 // pred_region
      _
    $region13: #{tpu_custom_call.1} parent=1 // pred_fallthru
      _
    // Predicated region
    $region14: #{tpu_custom_call.1} parent=1 // pred_check
      _
    $region15: #{tpu_custom_call.1} parent=1 // pred_check_branch
      %39 = sbr.rel (0) target = $region17
    $region16: #{tpu_custom_call.1} parent=1 // pred_region
      %s41 = ssub.s32 128, 128
      %42 = vsyncadd [#allocation7], %s41
      %s44 = sshll.u32 [#allocation8], 4
      %s45 = int_to_ptr.vmem [resolvable:$true] %s44
      %47 = dma.hbm_to_vmem [thread:$0]  %s3, 128, %s45, [#allocation7]
    $region17: #{tpu_custom_call.1} parent=1 // pred_fallthru
      _
    // Predicated region
    $region18: #{tpu_custom_call.1} parent=1 // pred_check
      _
    $region19: #{tpu_custom_call.1} parent=1 // pred_check_branch
      %49 = sbr.rel (0) target = $region21
    $region20: #{tpu_custom_call.1} parent=1 // pred_region
      _
    $region21: #{tpu_custom_call.1} parent=1 // pred_fallthru
      _
    // Predicated region
    $region22: #{tpu_custom_call.1} parent=1 // pred_check
      _
    $region23: #{tpu_custom_call.1} parent=1 // pred_check_branch
      %51 = sbr.rel (0) target = $region25
    $region24: #{tpu_custom_call.1} parent=1 // pred_region
      %52 = dma.done [#allocation4], 128
    $region25: #{tpu_custom_call.1} parent=1 // pred_fallthru
      _
    // Predicated region
    $region26: #{tpu_custom_call.1} parent=1 // pred_check
      _
    $region27: #{tpu_custom_call.1} parent=1 // pred_check_branch
      %54 = sbr.rel (0) target = $region29
    $region28: #{tpu_custom_call.1} parent=1 // pred_region
      %55 = dma.done [#allocation7], 512
    $region29: #{tpu_custom_call.1} parent=1 // pred_fallthru
      _
    // Predicated region
    $region30: #{tpu_custom_call.1} parent=1 // pred_check
      _
    $region31: #{tpu_custom_call.1} parent=1 // pred_check_branch
      %57 = sbr.rel (0) target = $region33
    $region32: #{tpu_custom_call.1} parent=1 // pred_region
      %58 = dma.done [#allocation7], 128
    $region33: #{tpu_custom_call.1} parent=1 // pred_fallthru
      _
    %v60 = vld [vmem:[#allocation3] sm:$0xff]
    %v61 = vpack.c.bf16 %v60, %v60
    %v62 = vld [vmem:[#allocation6] sm:$0xff]
    %v63 = vld [vmem:[#allocation6 + $0x8] sm:$0xff]
    %v64 = vld [vmem:[#allocation6 + $0x10] sm:$0xff]
    %v65 = vld [vmem:[#allocation6 + $0x18] sm:$0xff]
    %v66 = vpack.c.bf16 %v63, %v62
    %v67 = vpack.c.bf16 %v65, %v64
    %v68 = vld [vmem:[%s2] sm:$0x1]
    %v70 = vlaneseq
    %v71 = vshrl.u32 %v70, 7
    %v72 = vsub.s32 0, %v71
    %v73 = vrot.slane %v68, %v72
    %vm75 = vcmask 261120
    %v77 = vsel %vm75, %v61, 0
    %79 = vmatprep.subr.bf16.mxu0 0
    %80 = vmatpush1.bf16.msra.mxu0 0
    %81 = vmatprep.subr.bf16.mxu0 0
    %82 = vmatpush1.bf16.msra.mxu0 0
    %83 = vmatprep.subr.bf16.mxu0 0
    %84 = vmatpush1.bf16.msra.mxu0 0
    %85 = vmatprep.subr.bf16.mxu0 0
    %86 = vmatpush1.bf16.msra.mxu0 0
    %87 = vmatprep.subr.bf16.mxu0 0
    %88 = vmatpush1.bf16.msra.mxu0 0
    %89 = vmatprep.subr.bf16.mxu0 0
    %90 = vmatpush1.bf16.msra.mxu0 0
    %91 = vmatprep.subr.bf16.mxu0 0
    %92 = vmatpush1.bf16.msra.mxu0 %v67
    %93 = vmatprep.subr.bf16.mxu0 0
    %94 = vmatpush1.bf16.msra.mxu0 %v66
    %95 = vmatprep.subr.bf16.mxu0 0
    %96 = vmatpush2.bf16.msra.mxu0 0
    %97 = vmatprep.subr.bf16.mxu0 0
    %98 = vmatpush2.bf16.msra.mxu0 0
    %99 = vmatprep.subr.bf16.mxu0 0
    %100 = vmatpush2.bf16.msra.mxu0 0
    %101 = vmatprep.subr.bf16.mxu0 0
    %102 = vmatpush2.bf16.msra.mxu0 0
    %103 = vmatprep.subr.bf16.mxu0 0
    %104 = vmatpush2.bf16.msra.mxu0 0
    %105 = vmatprep.subr.bf16.mxu0 0
    %106 = vmatpush2.bf16.msra.mxu0 0
    %107 = vmatprep.subr.bf16.mxu0 0
    %108 = vmatpush2.bf16.msra.mxu0 0
    %109 = vmatprep.subr.bf16.mxu0 0
    %110 = vmatpush2.bf16.msra.mxu0 0
    %111 = vmatprep.mubr.bf16.mxu0 0
    %112 = vmatmul.mubr.bf16.gmra.mxu0 %v77
    %v113 = vpop.f32.mrf.mxu0
    %v114 = vadd.f32 %v73, %v113
    %v115 = vpop.f32.mrf.mxu0
    %v116 = vpop.f32.mrf.mxu0
    %v117 = vpop.f32.mrf.mxu0
    %118 = vdwg.mxu0
    %v119 = vmax.f32 %v114, 0.0
    %v120 = vld [vmem:[#allocation8] sm:$0xff]
    %v121 = vpack.c.bf16 %v120, %v120
    %v122 = vpack.c.bf16 %v119, %v119
    %123 = vmatprep.subr.bf16.mxu0 0
    %124 = vmatpush1.bf16.xpose.msra.mxu0 0
    %125 = vmatprep.subr.bf16.mxu0 0
    %126 = vmatpush1.bf16.xpose.msra.mxu0 0
    %127 = vmatprep.subr.bf16.mxu0 0
    %128 = vmatpush1.bf16.xpose.msra.mxu0 0
    %129 = vmatprep.subr.bf16.mxu0 0
    %130 = vmatpush1.bf16.xpose.msra.mxu0 0
    %131 = vmatprep.subr.bf16.mxu0 0
    %132 = vmatpush1.bf16.xpose.msra.mxu0 0
    %133 = vmatprep.subr.bf16.mxu0 0
    %134 = vmatpush1.bf16.xpose.msra.mxu0 0
    %135 = vmatprep.subr.bf16.mxu0 0
    %136 = vmatpush1.bf16.xpose.msra.mxu0 0
    %137 = vmatprep.subr.bf16.mxu0 0
    %138 = vmatpush1.bf16.xpose.msra.mxu0 %v122
    %139 = vmatprep.subr.bf16.mxu0 0
    %140 = vmatpush2.bf16.xpose.msra.mxu0 0
    %141 = vmatprep.subr.bf16.mxu0 0
    %142 = vmatpush2.bf16.xpose.msra.mxu0 0
    %143 = vmatprep.subr.bf16.mxu0 0
    %144 = vmatpush2.bf16.xpose.msra.mxu0 0
    %145 = vmatprep.subr.bf16.mxu0 0
    %146 = vmatpush2.bf16.xpose.msra.mxu0 0
    %147 = vmatprep.subr.bf16.mxu0 0
    %148 = vmatpush2.bf16.xpose.msra.mxu0 0
    %149 = vmatprep.subr.bf16.mxu0 0
    %150 = vmatpush2.bf16.xpose.msra.mxu0 0
    %151 = vmatprep.subr.bf16.mxu0 0
    %152 = vmatpush2.bf16.xpose.msra.mxu0 0
    %153 = vmatprep.subr.bf16.mxu0 0
    %154 = vmatpush2.bf16.xpose.msra.mxu0 0
    %155 = vmatprep.mubr.bf16.mxu0 0
    %156 = vmatmul.mubr.bf16.gmra.mxu0 %v121
    %v157 = vpop.f32.mrf.mxu0
    %v158 = vadd.f32 0.0, %v157
    %v159 = vpop.f32.mrf.mxu0
    %v160 = vpop.f32.mrf.mxu0
    %v161 = vpop.f32.mrf.mxu0
    %162 = vdwg.mxu0
    %s163 = sld [smem:[#allocation2]]
    %v164 = vstv %s163
    %v165 = vadd.f32 %v158, %v164
    %v166 = vmax.f32 %v165, -30.0
    %v167 = vmin.f32 %v166, 30.0
    %v168 = vsub.f32 0.0, %v167
    %v169 = vmul.f32 %v168, 1.442695
    %v170 = vpow.pop %v169
    %v171 = vadd.f32 %v170, 1.0
    %v172 = vrcp.pop %v171
    %vm173 = vcmask 57344
    %174 = vst.msk [vmem:[#allocation9] sm:$0x1] %vm173, %v172
    // Predicated region
    $region34: #{tpu_custom_call.1} parent=1 // pred_check
      _
    $region35: #{tpu_custom_call.1} parent=1 // pred_check_branch
      %176 = sbr.rel (0) target = $region37
    $region36: #{tpu_custom_call.1} parent=1 // pred_region
      %s178 = ssub.s32 16, 16
      %179 = vsyncadd [#allocation5], %s178
      %s181 = sshll.u32 [#allocation9], 4
      %s182 = int_to_ptr.vmem [resolvable:$true] %s181
      %184 = dma.vmem_to_hbm [thread:$0]  %s182, 16, %s5, [#allocation5]
    $region37: #{tpu_custom_call.1} parent=1 // pred_fallthru
      _
    // Predicated region
    $region38: #{tpu_custom_call.1} parent=1 // pred_check
      _
    $region39: #{tpu_custom_call.1} parent=1 // pred_check_branch
      %186 = sbr.rel (0) target = $region41
    $region40: #{tpu_custom_call.1} parent=1 // pred_region
      %187 = dma.done [#allocation5], 16
    $region41: #{tpu_custom_call.1} parent=1 // pred_fallthru
      _
    %188 = vsyncpa [#allocation4], 1
    %189 = vsyncpa [#allocation7], 1
    %190 = vsyncpa [#allocation5], 1

</llo_original>
